<compile_context>
chip_gen: v5e
topology: v5e:2x2
jax: 0.10.0
libtpu: 0.0.40
codegen_flags: <defaults>
</compile_context>

<pallas_src>
import math

import jax
import jax.numpy as jnp
from jax.experimental import pallas as pl
from jax.experimental.pallas import tpu as pltpu

_LANES = 128
_SUBLANES = 8
# ~2 MiB per input tile -> 4096 rows f32 / 8192 rows bf16.
_TARGET_TILE_BYTES = 2 * 1024 * 1024


def _round_up(x: int, m: int) -> int:
    return ((x + m - 1) // m) * m


def _rec_loss_kernel(ids_ref, cnt_ref, w_ref, t_ref, o_ref, acc_ref):
    i = pl.program_id(0)  # compacted sample slot ("parallel")
    j = pl.program_id(1)  # chunk along flattened feature dim ("arbitrary")

    @pl.when(j == 0)
    def _():
        # Single-vreg zero-fill (8 x 128 f32).
        acc_ref[...] = jnp.zeros_like(acc_ref)

    # Only real (label==1) slots contribute; padded slots keep acc == 0.
    @pl.when(i < cnt_ref[0])
    def _():
        d = w_ref[0].astype(jnp.float32) - t_ref[0].astype(jnp.float32)
        d2 = d * d                                   # (rc, 128), pure VPU
        rc = d2.shape[0]
        nfull = rc // _SUBLANES
        rem = rc - nfull * _SUBLANES                 # rem > 0 only when nc == 1
        if rem == 0:
            # Tile-aligned reshape (free) + VPU vreg-adds into one accumulator.
            acc_ref[...] += jnp.sum(
                d2.reshape(nfull, _SUBLANES, _LANES), axis=0)
        else:
            if nfull > 0:
                acc_ref[...] += jnp.sum(
                    d2[: nfull * _SUBLANES].reshape(nfull, _SUBLANES, _LANES),
                    axis=0)
            # Tail of < 8 rows folded into the first `rem` sublanes.
            acc_ref[0:rem, :] += d2[nfull * _SUBLANES:, :]

    @pl.when(j == pl.num_programs(1) - 1)
    def _():
        # Unmasked 8x128 store straight from the vreg accumulator; padded
        # slots write zeros.  Final reduction happens in the JAX epilogue.
        o_ref[...] = acc_ref[...].reshape(1, _SUBLANES, _LANES)


def _choose_chunking(n_elem: int, itemsize: int, tile_bytes: int):
    """Return (rc, nc, rows_total) with rc*nc == rows_total >= ceil(n_elem/128)."""
    rows = -(-n_elem // _LANES)  # ceil
    max_rows = max(_SUBLANES,
                   (tile_bytes // (_LANES * itemsize)) // _SUBLANES * _SUBLANES)
    if rows <= max_rows:
        # Single chunk equal to the full row extent (no (8,) constraint needed).
        return rows, 1, rows
    if n_elem % _LANES == 0:
        # Already lane-dense: try a multiple-of-8 divisor of rows so no
        # physical padding (and hence no jnp.pad HBM copy) is needed.
        min_rc = max(_SUBLANES, max_rows // 2)
        for rc in range(max_rows, min_rc - 1, -_SUBLANES):
            if rows % rc == 0:
                return rc, rows // rc, rows
    # Fallback: pad rows up so the chunks tile exactly.
    nc = -(-rows // max_rows)
    rc = _round_up(-(-rows // nc), _SUBLANES)
    return rc, nc, rc * nc


def rec_loss(warped_source, target, label, *, tile_bytes=_TARGET_TILE_BYTES):
    """Pallas implementation of RecLoss.forward.

    warped_source, target: (B, C, H, W) arrays (any float dtype; bf16 is ~2x
                           faster since the kernel is HBM-bandwidth-bound)
    label: (B,) int array (1 -> sample contributes its MSE)
    returns: scalar float32 loss = (sum_{i: label[i]==1} MSE_i) / 2
    """
    assert warped_source.shape == target.shape
    B = warped_source.shape[0]
    n_elem = math.prod(warped_source.shape[1:])
    itemsize = jnp.dtype(warped_source.dtype).itemsize

    rc, nc, rows_total = _choose_chunking(n_elem, itemsize, tile_bytes)
    total = rows_total * _LANES

    def to_tiles(x):
        flat = x.reshape(B, n_elem)
        if total != n_elem:
            # Zero padding in BOTH tensors -> diff == 0 -> contributes nothing.
            flat = jnp.pad(flat, ((0, 0), (0, total - n_elem)))
        return flat.reshape(B, rows_total, _LANES)

    w_tiles = to_tiles(warped_source)
    t_tiles = to_tiles(target)

    # Compacted ids (label==1 samples first, padded with the last selected id)
    # + selected count, delivered via scalar prefetch (SMEM).
    sel = (label.astype(jnp.int32) == 1)
    count = jnp.sum(sel.astype(jnp.int32))
    order = jnp.argsort(1 - sel.astype(jnp.int32)).astype(jnp.int32)
    last_valid = order[jnp.maximum(count - 1, 0)]
    slot = jnp.arange(B, dtype=jnp.int32)
    ids = jnp.where(slot < count, order, last_valid)
    count_arr = jnp.reshape(count, (1,)).astype(jnp.int32)

    def in_map(i, j, ids_ref, cnt_ref):
        # Padded slots (i >= count) point at chunk 0 of the last real sample:
        # identical block indices across consecutive steps -> no re-DMA.
        real = (i < cnt_ref[0]).astype(jnp.int32)
        return (ids_ref[i], j * real, 0)

    out = pl.pallas_call(
        _rec_loss_kernel,
        out_shape=jax.ShapeDtypeStruct((B, _SUBLANES, _LANES), jnp.float32),
        grid_spec=pltpu.PrefetchScalarGridSpec(
            num_scalar_prefetch=2,              # ids, count -> SMEM
            grid=(B, nc),                       # (sample slot, feature chunk)
            in_specs=[
                pl.BlockSpec((1, rc, _LANES), in_map),
                pl.BlockSpec((1, rc, _LANES), in_map),
            ],
            out_specs=pl.BlockSpec((1, _SUBLANES, _LANES),
                                   lambda i, j, ids, cnt: (i, 0, 0)),
            scratch_shapes=[pltpu.VMEM((_SUBLANES, _LANES), jnp.float32)],
        ),
        compiler_params=pltpu.CompilerParams(
            # Slot axis parallel (megacore on v7x, harmless on 1-TC chips);
            # feature-chunk axis is a per-sample reduction -> arbitrary.
            dimension_semantics=("parallel", "arbitrary"),
            vmem_limit_bytes=32 * 1024 * 1024,  # safe on v5e/v6e/v7x
        ),
        cost_estimate=pl.CostEstimate(
            flops=3 * B * n_elem,
            transcendentals=0,
            bytes_accessed=2 * B * n_elem * itemsize + B * _SUBLANES * _LANES * 4,
        ),
    )(ids, count_arr, w_tiles, t_tiles)

    # Tiny JAX epilogue: per-lane partial sums -> total squared error of the
    # selected samples, divided once by (C*H*W * 2).
    return jnp.sum(out) / jnp.float32(2.0 * n_elem)


def rec_loss_ref(warped_source, target, label):
    """Pure-JAX reference mirroring the PyTorch module."""
    diff = warped_source.astype(jnp.float32) - target.astype(jnp.float32)
    per_sample_mse = jnp.mean(diff.reshape(diff.shape[0], -1) ** 2, axis=1)
    mask = (label == 1).astype(jnp.float32)
    return jnp.sum(mask * per_sample_mse) / 2.0


if __name__ == "__main__":
    key = jax.random.PRNGKey(0)

    # Case 1: lane-aligned feature count (C*H*W = 1024), mixed labels, nc == 1.
    k1, k2, key = jax.random.split(key, 3)
    ws1 = jax.random.normal(k1, (4, 4, 16, 16), dtype=jnp.float32)
    tg1 = jax.random.normal(k2, (4, 4, 16, 16), dtype=jnp.float32)
    lb1 = jnp.array([1, 0, 1, 1], dtype=jnp.int32)
    loss1 = jax.block_until_ready(rec_loss(ws1, tg1, lb1))
    ref1 = rec_loss_ref(ws1, tg1, lb1)
    assert jnp.allclose(loss1, ref1, rtol=1e-5, atol=1e-6), (loss1, ref1)

    # Case 2: ragged feature count (105 elems -> tail-padded to one 128-lane row).
    k3, k4, key = jax.random.split(key, 3)
    ws2 = jax.random.normal(k3, (2, 3, 5, 7), dtype=jnp.float32)
    tg2 = jax.random.normal(k4, (2, 3, 5, 7), dtype=jnp.float32)
    lb2 = jnp.array([0, 1], dtype=jnp.int32)
    loss2 = jax.block_until_ready(rec_loss(ws2, tg2, lb2))
    ref2 = rec_loss_ref(ws2, tg2, lb2)
    assert jnp.allclose(loss2, ref2, rtol=1e-5, atol=1e-6), (loss2, ref2)

    # Case 3: multi-chunk path (nc > 1, no padding) with a skipped label==0 slot.
    k5, k6, key = jax.random.split(key, 3)
    ws3 = jax.random.normal(k5, (3, 8, 32, 64), dtype=jnp.float32)
    tg3 = jax.random.normal(k6, (3, 8, 32, 64), dtype=jnp.float32)
    lb3 = jnp.array([1, 0, 1], dtype=jnp.int32)
    loss3 = jax.block_until_ready(rec_loss(ws3, tg3, lb3, tile_bytes=16 * 1024))
    ref3 = rec_loss_ref(ws3, tg3, lb3)
    assert jnp.allclose(loss3, ref3, rtol=1e-5, atol=1e-6), (loss3, ref3)

    # Case 4: bf16 inputs (halved HBM traffic; cast to f32 in-kernel).
    k7, k8, key = jax.random.split(key, 3)
    ws4 = jax.random.normal(k7, (2, 4, 16, 16), dtype=jnp.bfloat16)
    tg4 = jax.random.normal(k8, (2, 4, 16, 16), dtype=jnp.bfloat16)
    lb4 = jnp.array([1, 1], dtype=jnp.int32)
    loss4 = jax.block_until_ready(rec_loss(ws4, tg4, lb4))
    ref4 = rec_loss_ref(ws4, tg4, lb4)
    assert jnp.allclose(loss4, ref4, rtol=1e-4, atol=1e-5), (loss4, ref4)

    # Case 5: no selected samples -> loss == 0.
    lb5 = jnp.zeros((4,), dtype=jnp.int32)
    loss5 = jax.block_until_ready(rec_loss(ws1, tg1, lb5))
    assert jnp.allclose(loss5, 0.0, atol=1e-7), loss5

    print("KERNEL_OK")
</pallas_src>

<mosaic_0001>
module attributes {stable_mosaic.version = 11 : i64} {
  func.func @_rec_loss_kernel(%arg0: i32, %arg1: i32, %arg2: memref<4xi32, #tpu.memory_space<smem>>, %arg3: memref<1xi32, #tpu.memory_space<smem>>, %arg4: memref<1x8x128xf32, #tpu.memory_space<vmem>>, %arg5: memref<1x8x128xf32, #tpu.memory_space<vmem>>, %arg6: memref<1x8x128xf32, #tpu.memory_space<vmem>>, %arg7: memref<8x128xf32, #tpu.memory_space<vmem>>) attributes {dimension_semantics = [#tpu.dimension_semantics<parallel>, #tpu.dimension_semantics<arbitrary>], iteration_bounds = array<i64: 4, 1>, scalar_prefetch = 2 : i64, scratch_operands = 1 : i64, tpu.core_type = #tpu.core_type<tc>, window_params = [{transform_indices = @transform_0, window_bounds = array<i64: 1, 8, 128>}, {transform_indices = @transform_1, window_bounds = array<i64: 1, 8, 128>}, {transform_indices = @transform_2, window_bounds = array<i64: 1, 8, 128>}]} {
    %c0_i32 = arith.constant 0 : i32
    %0 = arith.cmpi eq, %arg1, %c0_i32 : i32
    %1 = arith.extui %0 : i1 to i32
    %c0_i32_0 = arith.constant 0 : i32
    %2 = arith.cmpi ne, %1, %c0_i32_0 : i32
    scf.if %2 {
      %cst = arith.constant 0.000000e+00 : f32
      %10 = vector.broadcast %cst : f32 to vector<8x128xf32>
      %c0_4 = arith.constant 0 : index
      %c0_5 = arith.constant 0 : index
      %11 = vector.load %arg7[%c0_4, %c0_5] : memref<8x128xf32, #tpu.memory_space<vmem>>, vector<8x128xf32>
      tpu.vector_store %arg7[%c0_4, %c0_5], %10 {strides = array<i32>} : memref<8x128xf32, #tpu.memory_space<vmem>>, vector<8x128xf32>,
    } else {
    }
    %c0 = arith.constant 0 : index
    %3 = memref.load %arg3[%c0] : memref<1xi32, #tpu.memory_space<smem>>
    %4 = arith.cmpi slt, %arg0, %3 : i32
    %5 = arith.extui %4 : i1 to i32
    %c0_i32_1 = arith.constant 0 : i32
    %6 = arith.cmpi ne, %5, %c0_i32_1 : i32
    scf.if %6 {
      %c0_4 = arith.constant 0 : index
      %c0_5 = arith.constant 0 : index
      %c0_6 = arith.constant 0 : index
      %10 = vector.load %arg4[%c0_4, %c0_5, %c0_6] : memref<1x8x128xf32, #tpu.memory_space<vmem>>, vector<1x8x128xf32>
      %11 = vector.shape_cast %10 : vector<1x8x128xf32> to vector<8x128xf32>
      %c0_7 = arith.constant 0 : index
      %c0_8 = arith.constant 0 : index
      %c0_9 = arith.constant 0 : index
      %12 = vector.load %arg5[%c0_7, %c0_8, %c0_9] : memref<1x8x128xf32, #tpu.memory_space<vmem>>, vector<1x8x128xf32>
      %13 = vector.shape_cast %12 : vector<1x8x128xf32> to vector<8x128xf32>
      %14 = arith.subf %11, %13 : vector<8x128xf32>
      %15 = arith.mulf %14, %14 : vector<8x128xf32>
      %c0_10 = arith.constant 0 : index
      %c0_11 = arith.constant 0 : index
      %16 = vector.load %arg7[%c0_10, %c0_11] : memref<8x128xf32, #tpu.memory_space<vmem>>, vector<8x128xf32>
      %17 = vector.shape_cast %15 : vector<8x128xf32> to vector<1x8x128xf32>
      %cst = arith.constant dense<0.000000e+00> : vector<8x128xf32>
      %18 = vector.multi_reduction <add>, %17, %cst [0] : vector<1x8x128xf32> to vector<8x128xf32>
      %19 = arith.addf %16, %18 : vector<8x128xf32>
      %c0_12 = arith.constant 0 : index
      %c0_13 = arith.constant 0 : index
      %20 = vector.load %arg7[%c0_12, %c0_13] : memref<8x128xf32, #tpu.memory_space<vmem>>, vector<8x128xf32>
      tpu.vector_store %arg7[%c0_12, %c0_13], %19 {strides = array<i32>} : memref<8x128xf32, #tpu.memory_space<vmem>>, vector<8x128xf32>,
    } else {
    }
    %c0_i32_2 = arith.constant 0 : i32
    %7 = arith.cmpi eq, %arg1, %c0_i32_2 : i32
    %8 = arith.extui %7 : i1 to i32
    %c0_i32_3 = arith.constant 0 : i32
    %9 = arith.cmpi ne, %8, %c0_i32_3 : i32
    scf.if %9 {
      %c0_4 = arith.constant 0 : index
      %c0_5 = arith.constant 0 : index
      %10 = vector.load %arg7[%c0_4, %c0_5] : memref<8x128xf32, #tpu.memory_space<vmem>>, vector<8x128xf32>
      %11 = vector.shape_cast %10 : vector<8x128xf32> to vector<1x8x128xf32>
      %c0_6 = arith.constant 0 : index
      %c0_7 = arith.constant 0 : index
      %c0_8 = arith.constant 0 : index
      %12 = vector.load %arg6[%c0_6, %c0_7, %c0_8] : memref<1x8x128xf32, #tpu.memory_space<vmem>>, vector<1x8x128xf32>
      tpu.vector_store %arg6[%c0_6, %c0_7, %c0_8], %11 {strides = array<i32>} : memref<1x8x128xf32, #tpu.memory_space<vmem>>, vector<1x8x128xf32>,
    } else {
    }
    return
  }
  func.func @transform_0(%arg0: i32, %arg1: i32, %arg2: memref<4xi32, #tpu.memory_space<smem>>, %arg3: memref<1xi32, #tpu.memory_space<smem>>) -> (i32, i32, i32) {
    %c0 = arith.constant 0 : index
    %0 = memref.load %arg3[%c0] : memref<1xi32, #tpu.memory_space<smem>>
    %1 = arith.cmpi slt, %arg0, %0 : i32
    %2 = arith.extui %1 : i1 to i32
    %3 = arith.index_cast %arg0 : i32 to index
    %4 = memref.load %arg2[%3] : memref<4xi32, #tpu.memory_space<smem>>
    %5 = arith.muli %arg1, %2 : i32
    %c0_i32 = arith.constant 0 : i32
    %c0_i32_0 = arith.constant 0 : i32
    return %4, %5, %c0_i32 : i32, i32, i32
  }
  func.func @transform_1(%arg0: i32, %arg1: i32, %arg2: memref<4xi32, #tpu.memory_space<smem>>, %arg3: memref<1xi32, #tpu.memory_space<smem>>) -> (i32, i32, i32) {
    %c0 = arith.constant 0 : index
    %0 = memref.load %arg3[%c0] : memref<1xi32, #tpu.memory_space<smem>>
    %1 = arith.cmpi slt, %arg0, %0 : i32
    %2 = arith.extui %1 : i1 to i32
    %3 = arith.index_cast %arg0 : i32 to index
    %4 = memref.load %arg2[%3] : memref<4xi32, #tpu.memory_space<smem>>
    %5 = arith.muli %arg1, %2 : i32
    %c0_i32 = arith.constant 0 : i32
    %c0_i32_0 = arith.constant 0 : i32
    return %4, %5, %c0_i32 : i32, i32, i32
  }
  func.func @transform_2(%arg0: i32, %arg1: i32, %arg2: memref<4xi32, #tpu.memory_space<smem>>, %arg3: memref<1xi32, #tpu.memory_space<smem>>) -> (i32, i32, i32) {
    %c0_i32 = arith.constant 0 : i32
    %c0_i32_0 = arith.constant 0 : i32
    %c0_i32_1 = arith.constant 0 : i32
    return %arg0, %c0_i32, %c0_i32_0 : i32, i32, i32
  }
}

</mosaic_0001>

<llo_original>
// kernel: tpu_custom_call.1
$region0: #{tpu_custom_call.1}
  #allocation0 [shape = 'u32[]', space=smem, size = 0x4, offset = 0x4, fixed_abs, tag = 'smem constant byte address 0x4 - core index']
  #allocation1 [shape = 'u32[72,128]{1,0:T(1,128)}', space=vmem, size = 0x9000, scoped, tag = 'internal scratch']
  #allocation2 [shape = 'f32[8,128]{1,0:T(8,128)}', space=vmem, size = 0x1000, scoped, tag = 'scratch operand']
  #allocation3 [shape = 's32[1]{0}', space=sflag, size = 0x4, scoped, tag = 'scoped memory for tpu_custom_call.1']
  #allocation4 [shape = 'u8[512]{0}', space=smem, size = 0x200, scoped, tag = 'prefetched SMEM operand 0']
  #allocation5 [shape = 's32[1]{0:T(128)S(6)}', space=smem, size = 0x200, scoped, tag = 'prefetched SMEM operand 1']
  %s0 = inlined_call_operand.vmem [shape: s32[4], index: 0, kind: input, shape index: {}]
  %s1 = inlined_call_operand.<no memory space> [shape: s32[1], index: 1, kind: input, shape index: {}]
  %s2 = inlined_call_operand.hbm [shape: f32[4,8,128], index: 2, kind: input, shape index: {}]
  %s3 = inlined_call_operand.hbm [shape: f32[4,8,128], index: 3, kind: input, shape index: {}]
  %s4 = inlined_call_operand.hbm [shape: f32[4,8,128], index: 4, kind: output, shape index: {}]
  %s5 = sld [smem:[#allocation0]]
  $region61: #{tpu_custom_call.1} parent=0
    _
  %s7 = ssub.s32 1, %s5
  %s8 = scalar_select 0, %s7, %s5
  %s10 = sshll.u32 %s0, 4
  %s11 = int_to_ptr.vmem [resolvable:$true] %s10
  %13 = dma.vmem_to_smem %s11, 16, [#allocation4], [#allocation3]
  %14 = sst [smem:[#allocation5]] %s1
  %16 = dma.done [#allocation3], 16
  %17 = sfence
  $region1: #{tpu_custom_call.1} parent=0
    #allocation6 [shape = 'u8[8192]{0}', space=vmem, size = 0x2000, scoped, tag = 'input window, operand 2']
    #allocation7 [shape = 's32[2]{0}', space=sflag, size = 0x8, scoped, tag = 'scoped memory for tpu_custom_call.1']
    #allocation8 [shape = 's32[2]{0}', space=sflag, size = 0x8, scoped, tag = 'scoped memory for tpu_custom_call.1']
    #allocation9 [shape = 'u8[8192]{0}', space=vmem, size = 0x2000, scoped, tag = 'input window, operand 3']
    #allocation10 [shape = 's32[2]{0}', space=sflag, size = 0x8, scoped, tag = 'scoped memory for tpu_custom_call.1']
    #allocation11 [shape = 'u8[8192]{0}', space=vmem, size = 0x2000, scoped, tag = 'output window, operand 0']
    %18 = vsyncpa [#allocation7], 0
    %s19 = scalar_lea.sflag [#allocation7], 1
    %20 = vsyncpa %s19, 0
    %21 = vsyncpa [#allocation10], 0
    %s22 = scalar_lea.sflag [#allocation10], 1
    %23 = vsyncpa %s22, 0
    %24 = vsyncpa [#allocation8], 0
    %s25 = scalar_lea.sflag [#allocation8], 1
    %26 = vsyncpa %s25, 0
    loop: start=0, step=1, limit=6
    $region2: #{tpu_custom_call.1} parent=1 // loop_pre_header
      _
    $region3: #{tpu_custom_call.1} parent=1 // loop_header
      %s28 = sphi 0, %s32
      %p29 = scmp.ge.s32.totalorder %s28, 6
      %s35 = sphi 0, %s47
      %s36 = sphi 0, %s43
      %s37 = sphi 0, %s35
      %s38 = sphi 0, %s36
      %s39 = sphi 0, %s37
      %s40 = sphi 0, %s38
      %s62 = sphi 0, %s64
      %s65 = sphi 0, %s62
      %s66 = sphi 0, %s65
      %s82 = sphi 0, %s66
      %s100 = sphi 0, %s102
      %s103 = sphi 0, %s100
      %s104 = sphi 0, %s103
      %s120 = sphi 0, %s104
      %s126 = sphi 0, %s128
      %s129 = sphi 0, %s126
      %s130 = sphi 0, %s129
      %s146 = sphi 0, %s130
    $region4: #{tpu_custom_call.1} parent=1 // loop_header_branch
      %31 = sbr.rel (%p29) target = $region8
    $region5: #{tpu_custom_call.1} parent=1 // loop_body
      %s33 = ssub.s32 %s28, 1
      %s34 = ssub.s32 %s28, 2
      %s41 = sadd.s32 1, %s36
      %p42 = scmp.ge.s32.totalorder %s41, 1
      %s43 = scalar_select %p42, 0, %s41
      %s44 = sadd.s32 1, %s35
      %s45 = scalar_select %p42, %s44, %s35
      %p46 = scmp.ge.s32.totalorder %s45, 4
      %s47 = scalar_select %p46, 0, %s45
      %s48 = sld [smem:[#allocation5]]
      %p49 = scmp.lt.s32.totalorder %s35, %s48
      %s50 = scalar_select %p49, 1, 0
      %s51 = sld [smem:[#allocation4 + %s35]]
      %s52 = smul.u32 %s36, %s50
      %s53 = sld [smem:[#allocation5]]
      %p54 = scmp.lt.s32.totalorder %s47, %s53
      %s55 = scalar_select %p54, 1, 0
      %s56 = sld [smem:[#allocation4 + %s47]]
      %s57 = smul.u32 %s43, %s55
      %s58 = ssub.s32 %s51, %s56
      %s59 = ssub.s32 %s52, %s57
      %s60 = sor.u32 %s58, %s59
      %p61 = scmp.eq.s32.totalorder %s60, 0
      %s63 = sadd.s32 %s62, 1
      %s64 = scalar_select %p61, %s62, %s63
      %p67 = pneg %p61
      %p68 = scmp.eq.s32.totalorder %s28, 3
      %p69 = por %p67, %p68
      %p70 = scmp.ne.s32.totalorder %s62, %s65
      %p71 = scmp.eq.s32.totalorder %s28, 0
      %p72 = por %p70, %p71
      %p73 = scmp.ne.s32.totalorder %s62, %s65
      %p74 = scmp.eq.s32.totalorder %s33, 3
      %p75 = por %p73, %p74
      %p76 = scmp.ne.s32.totalorder %s65, %s66
      %p77 = scmp.eq.s32.totalorder %s33, 0
      %p78 = por %p76, %p77
      %p79 = scmp.ne.s32.totalorder %s65, %s66
      %p80 = scmp.eq.s32.totalorder %s34, 3
      %p81 = por %p79, %p80
      %p83 = scmp.ne.s32.totalorder %s66, %s82
      %p84 = scmp.eq.s32.totalorder %s34, 0
      %p85 = por %p83, %p84
      %s86 = sld [smem:[#allocation5]]
      %p87 = scmp.lt.s32.totalorder %s35, %s86
      %s88 = scalar_select %p87, 1, 0
      %s89 = sld [smem:[#allocation4 + %s35]]
      %s90 = smul.u32 %s36, %s88
      %s91 = sld [smem:[#allocation5]]
      %p92 = scmp.lt.s32.totalorder %s47, %s91
      %s93 = scalar_select %p92, 1, 0
      %s94 = sld [smem:[#allocation4 + %s47]]
      %s95 = smul.u32 %s43, %s93
      %s96 = ssub.s32 %s89, %s94
      %s97 = ssub.s32 %s90, %s95
      %s98 = sor.u32 %s96, %s97
      %p99 = scmp.eq.s32.totalorder %s98, 0
      %s101 = sadd.s32 %s100, 1
      %s102 = scalar_select %p99, %s100, %s101
      %p105 = pneg %p99
      %p106 = scmp.eq.s32.totalorder %s28, 3
      %p107 = por %p105, %p106
      %p108 = scmp.ne.s32.totalorder %s100, %s103
      %p109 = scmp.eq.s32.totalorder %s28, 0
      %p110 = por %p108, %p109
      %p111 = scmp.ne.s32.totalorder %s100, %s103
      %p112 = scmp.eq.s32.totalorder %s33, 3
      %p113 = por %p111, %p112
      %p114 = scmp.ne.s32.totalorder %s103, %s104
      %p115 = scmp.eq.s32.totalorder %s33, 0
      %p116 = por %p114, %p115
      %p117 = scmp.ne.s32.totalorder %s103, %s104
      %p118 = scmp.eq.s32.totalorder %s34, 3
      %p119 = por %p117, %p118
      %p121 = scmp.ne.s32.totalorder %s104, %s120
      %p122 = scmp.eq.s32.totalorder %s34, 0
      %p123 = por %p121, %p122
      %s124 = ssub.s32 %s35, %s47
      %p125 = scmp.eq.s32.totalorder %s124, 0
      %s127 = sadd.s32 %s126, 1
      %s128 = scalar_select %p125, %s126, %s127
      %p131 = pneg %p125
      %p132 = scmp.eq.s32.totalorder %s28, 3
      %p133 = por %p131, %p132
      %p134 = scmp.ne.s32.totalorder %s126, %s129
      %p135 = scmp.eq.s32.totalorder %s28, 0
      %p136 = por %p134, %p135
      %p137 = scmp.ne.s32.totalorder %s126, %s129
      %p138 = scmp.eq.s32.totalorder %s33, 3
      %p139 = por %p137, %p138
      %p140 = scmp.ne.s32.totalorder %s129, %s130
      %p141 = scmp.eq.s32.totalorder %s33, 0
      %p142 = por %p140, %p141
      %p143 = scmp.ne.s32.totalorder %s129, %s130
      %p144 = scmp.eq.s32.totalorder %s34, 3
      %p145 = por %p143, %p144
      %p147 = scmp.ne.s32.totalorder %s130, %s146
      %p148 = scmp.eq.s32.totalorder %s34, 0
      %p149 = por %p147, %p148
      %p150 = scmp.le.s32.totalorder 1, %s28
      %p151 = scmp.lt.s32.totalorder %s28, 5
      %p152 = pnand %p150, %p151
      %p153 = pneg %p152
      // Predicated region
      $region9: #{tpu_custom_call.1} parent=5 // pred_check
        _
      $region10: #{tpu_custom_call.1} parent=5 // pred_check_branch
        %155 = sbr.rel (%p152) target = $region12
      $region11: #{tpu_custom_call.1} parent=5 // pred_region
        %s156 = ssub.s32 %s28, 1
      $region12: #{tpu_custom_call.1} parent=5 // pred_fallthru
        _
      %p157 = scmp.lt.s32.totalorder %s28, 4
      // Predicated region
      $region13: #{tpu_custom_call.1} parent=5 // pred_check
        %p158 = pneg %p157
      $region14: #{tpu_custom_call.1} parent=5 // pred_check_branch
        %160 = sbr.rel (%p158) target = $region16
      $region15: #{tpu_custom_call.1} parent=5 // pred_region
        // Predicated region
        $region17: #{tpu_custom_call.1} parent=15 // pred_check
          %p161 = pneg %p72
        $region18: #{tpu_custom_call.1} parent=15 // pred_check_branch
          %163 = sbr.rel (%p161) target = $region20
        $region19: #{tpu_custom_call.1} parent=15 // pred_region
          %s164 = sand.u32 %s62, 1
          %s165 = scalar_lea.sflag [#allocation7], %s164
          %s166 = sand.u32 %s62, 1
          %s167 = smul.addr %s166, 8
          %s168 = scalar_lea.vmem [#allocation6], %s167
          %s169 = sld [smem:[#allocation5]]
          %p170 = scmp.lt.s32.totalorder %s35, %s169
          %s171 = scalar_select %p170, 1, 0
          %s172 = sld [smem:[#allocation4 + %s35]]
          %s173 = smul.u32 %s36, %s171
          %175 = vsyncadd %s165, 0
          %s176 = sadd.s32 %s173, %s172
          %s177 = smul.addr %s176, 8
          %s178 = scalar_lea.hbm %s2, %s177
          %s180 = sshll.u32 %s178, 4
          %s181 = int_to_ptr.hbm [resolvable:$true] %s180
          %s182 = sshll.u32 %s168, 4
          %s183 = int_to_ptr.vmem [resolvable:$true] %s182
          %185 = dma.hbm_to_vmem [thread:$0]  %s181, 128, %s183, %s165
        $region20: #{tpu_custom_call.1} parent=15 // pred_fallthru
          _
        // Predicated region
        $region21: #{tpu_custom_call.1} parent=15 // pred_check
          %p186 = pneg %p110
        $region22: #{tpu_custom_call.1} parent=15 // pred_check_branch
          %188 = sbr.rel (%p186) target = $region24
        $region23: #{tpu_custom_call.1} parent=15 // pred_region
          %s189 = sand.u32 %s100, 1
          %s190 = scalar_lea.sflag [#allocation10], %s189
          %s191 = sand.u32 %s100, 1
          %s192 = smul.addr %s191, 8
          %s193 = scalar_lea.vmem [#allocation9], %s192
          %s194 = sld [smem:[#allocation5]]
          %p195 = scmp.lt.s32.totalorder %s35, %s194
          %s196 = scalar_select %p195, 1, 0
          %s197 = sld [smem:[#allocation4 + %s35]]
          %s198 = smul.u32 %s36, %s196
          %200 = vsyncadd %s190, 0
          %s201 = sadd.s32 %s198, %s197
          %s202 = smul.addr %s201, 8
          %s203 = scalar_lea.hbm %s3, %s202
          %s205 = sshll.u32 %s203, 4
          %s206 = int_to_ptr.hbm [resolvable:$true] %s205
          %s207 = sshll.u32 %s193, 4
          %s208 = int_to_ptr.vmem [resolvable:$true] %s207
          %210 = dma.hbm_to_vmem [thread:$0]  %s206, 128, %s208, %s190
        $region24: #{tpu_custom_call.1} parent=15 // pred_fallthru
          _
      $region16: #{tpu_custom_call.1} parent=5 // pred_fallthru
        _
      %p211 = scmp.le.s32.totalorder 1, %s28
      %p212 = scmp.lt.s32.totalorder %s28, 5
      %p213 = pnand %p211, %p212
      %p214 = pneg %p213
      // Predicated region
      $region25: #{tpu_custom_call.1} parent=5 // pred_check
        _
      $region26: #{tpu_custom_call.1} parent=5 // pred_check_branch
        %216 = sbr.rel (%p213) target = $region28
      $region27: #{tpu_custom_call.1} parent=5 // pred_region
        %s217 = ssub.s32 %s28, 1
        %s218 = sand.u32 %s65, 1
        %s219 = scalar_lea.sflag [#allocation7], %s218
        %s220 = sand.u32 %s65, 1
        %s221 = smul.addr %s220, 8
        %s222 = scalar_lea.vmem [#allocation6], %s221
        // Predicated region
        $region29: #{tpu_custom_call.1} parent=27 // pred_check
          %p223 = pneg %p78
        $region30: #{tpu_custom_call.1} parent=27 // pred_check_branch
          %225 = sbr.rel (%p223) target = $region32
        $region31: #{tpu_custom_call.1} parent=27 // pred_region
          %227 = dma.done %s219, 128
        $region32: #{tpu_custom_call.1} parent=27 // pred_fallthru
          _
        %s228 = sand.u32 %s103, 1
        %s229 = scalar_lea.sflag [#allocation10], %s228
        %s230 = sand.u32 %s103, 1
        %s231 = smul.addr %s230, 8
        %s232 = scalar_lea.vmem [#allocation9], %s231
        // Predicated region
        $region33: #{tpu_custom_call.1} parent=27 // pred_check
          %p233 = pneg %p116
        $region34: #{tpu_custom_call.1} parent=27 // pred_check_branch
          %235 = sbr.rel (%p233) target = $region36
        $region35: #{tpu_custom_call.1} parent=27 // pred_region
          %237 = dma.done %s229, 128
        $region36: #{tpu_custom_call.1} parent=27 // pred_fallthru
          _
        %s238 = sand.u32 %s65, 1
        %s239 = scalar_lea.sflag [#allocation7], %s238
        %s240 = sand.u32 %s65, 1
        %s241 = smul.addr %s240, 8
        %s242 = scalar_lea.vmem [#allocation6], %s241
        %p243 = pneg %p78
        %p244 = pneg %p75
        %s245 = sand.u32 %s103, 1
        %s246 = scalar_lea.sflag [#allocation10], %s245
        %s247 = sand.u32 %s103, 1
        %s248 = smul.addr %s247, 8
        %s249 = scalar_lea.vmem [#allocation9], %s248
        %p250 = pneg %p116
        %p251 = pneg %p113
        %p252 = pneg %p142
        %p253 = pneg %p139
        %s254 = sand.u32 %s129, 1
        %s255 = scalar_lea.sflag [#allocation8], %s254
        %s256 = sand.u32 %s129, 1
        %s257 = smul.addr %s256, 8
        %s258 = scalar_lea.vmem [#allocation11], %s257
        %s259 = sld [smem:[#allocation5]]
        %p260 = scmp.lt.s32.totalorder %s37, %s259
        %s261 = scalar_select %p260, 1, 0
        %s262 = sld [smem:[#allocation4 + %s37]]
        %s263 = smul.u32 %s38, %s261
        %s264 = sld [smem:[#allocation5]]
        %p265 = scmp.lt.s32.totalorder %s37, %s264
        %s266 = scalar_select %p265, 1, 0
        %s267 = sld [smem:[#allocation4 + %s37]]
        %s268 = smul.u32 %s38, %s266
        %p269 = scmp.eq.s32.totalorder %s38, 0
        // Predicated region
        $region37: #{tpu_custom_call.1} parent=27 // pred_check
          %p270 = pneg %p269
        $region38: #{tpu_custom_call.1} parent=27 // pred_check_branch
          %272 = sbr.rel (%p270) target = $region40
        $region39: #{tpu_custom_call.1} parent=27 // pred_region
          %273 = vst [vmem:[#allocation2] sm:$0xff] 0.0
        $region40: #{tpu_custom_call.1} parent=27 // pred_fallthru
          _
        %s274 = sld [smem:[#allocation5]]
        %p275 = scmp.lt.s32.totalorder %s37, %s274
        // Predicated region
        $region41: #{tpu_custom_call.1} parent=27 // pred_check
          %p276 = pneg %p275
        $region42: #{tpu_custom_call.1} parent=27 // pred_check_branch
          %278 = sbr.rel (%p276) target = $region44
        $region43: #{tpu_custom_call.1} parent=27 // pred_region
          %v279 = vld [vmem:[%s222] sm:$0xff]
          %v280 = vld [vmem:[%s232] sm:$0xff]
          %v281 = vsub.f32 %v279, %v280
          %v282 = vmul.f32 %v281, %v281
          %v283 = vld [vmem:[#allocation2] sm:$0xff]
          %v284 = vadd.f32 %v282, 0.0
          %v285 = vadd.f32 %v283, %v284
          %286 = vst [vmem:[#allocation2] sm:$0xff] %v285
        $region44: #{tpu_custom_call.1} parent=27 // pred_fallthru
          _
        // Predicated region
        $region45: #{tpu_custom_call.1} parent=27 // pred_check
          %p287 = pneg %p269
        $region46: #{tpu_custom_call.1} parent=27 // pred_check_branch
          %289 = sbr.rel (%p287) target = $region48
        $region47: #{tpu_custom_call.1} parent=27 // pred_region
          %v290 = vld [vmem:[#allocation2] sm:$0xff]
          %291 = vst [vmem:[%s258] sm:$0xff] %v290
        $region48: #{tpu_custom_call.1} parent=27 // pred_fallthru
          _
        %s292 = sand.u32 %s129, 1
        %s293 = scalar_lea.sflag [#allocation8], %s292
        %s294 = sand.u32 %s129, 1
        %s295 = smul.addr %s294, 8
        %s296 = scalar_lea.vmem [#allocation11], %s295
        // Predicated region
        $region49: #{tpu_custom_call.1} parent=27 // pred_check
          %p297 = pneg %p139
        $region50: #{tpu_custom_call.1} parent=27 // pred_check_branch
          %299 = sbr.rel (%p297) target = $region52
        $region51: #{tpu_custom_call.1} parent=27 // pred_region
          %301 = vsyncadd %s293, 0
          %s302 = smul.addr %s37, 8
          %s303 = scalar_lea.hbm %s4, %s302
          %s305 = sshll.u32 %s296, 4
          %s306 = int_to_ptr.vmem [resolvable:$true] %s305
          %s307 = sshll.u32 %s303, 4
          %s308 = int_to_ptr.hbm [resolvable:$true] %s307
          %310 = dma.vmem_to_hbm [thread:$0]  %s306, 128, %s308, %s293
        $region52: #{tpu_custom_call.1} parent=27 // pred_fallthru
          _
      $region28: #{tpu_custom_call.1} parent=5 // pred_fallthru
        _
      %p311 = scmp.le.s32.totalorder 2, %s28
      // Predicated region
      $region53: #{tpu_custom_call.1} parent=5 // pred_check
        %p312 = pneg %p311
      $region54: #{tpu_custom_call.1} parent=5 // pred_check_branch
        %314 = sbr.rel (%p312) target = $region56
      $region55: #{tpu_custom_call.1} parent=5 // pred_region
        %s315 = ssub.s32 %s28, 2
        // Predicated region
        $region57: #{tpu_custom_call.1} parent=55 // pred_check
          %p316 = pneg %p145
        $region58: #{tpu_custom_call.1} parent=55 // pred_check_branch
          %318 = sbr.rel (%p316) target = $region60
        $region59: #{tpu_custom_call.1} parent=55 // pred_region
          %s319 = sand.u32 %s130, 1
          %s320 = scalar_lea.sflag [#allocation8], %s319
          %s321 = sand.u32 %s130, 1
          %s322 = smul.addr %s321, 8
          %s323 = scalar_lea.vmem [#allocation11], %s322
          %325 = dma.done %s320, 128
        $region60: #{tpu_custom_call.1} parent=55 // pred_fallthru
          _
      $region56: #{tpu_custom_call.1} parent=5 // pred_fallthru
        _
    $region6: #{tpu_custom_call.1} parent=1 // loop_footer
      %s32 = sadd.s32 1, %s28
    $region7: #{tpu_custom_call.1} parent=1 // loop_footer_branch
      %27 = sbr.rel target = $region3
    $region8: #{tpu_custom_call.1} parent=1 // loop_exit
      _
    %326 = vsyncpa [#allocation7], 1
    %s327 = scalar_lea.sflag [#allocation7], 1
    %328 = vsyncpa %s327, 1
    %329 = vsyncpa [#allocation10], 1
    %s330 = scalar_lea.sflag [#allocation10], 1
    %331 = vsyncpa %s330, 1
    %332 = vsyncpa [#allocation8], 1
    %s333 = scalar_lea.sflag [#allocation8], 1
    %334 = vsyncpa %s333, 1

</llo_original>
